<compile_context>
chip_gen: v6e
topology: v6e:2x2x1
jax: 0.10.0
libtpu: 0.0.40
codegen_flags: <defaults>
</compile_context>

<pallas_src>
import functools
import math

import jax
import jax.numpy as jnp
from jax import lax
from jax.experimental import pallas as pl
from jax.experimental.pallas import tpu as pltpu


def _round_up(x, m):
    return (x + m - 1) // m * m


def _cdiv(a, b):
    return -(-a // b)


def _sepconv1d_kernel(xa_ref, xb_ref, w_ref, b_ref, o_ref, win_ref, *,
                      kernel, stride, mult, rows, tl):
    """One (batch-block, L-tile) step of the depthwise conv.

    xa_ref : (stride*rows, tl)        main input window, row = r*rows + b*ni + c
    xb_ref : (stride*rows, halo_w)    first halo_w lanes of the *next* L tile
    w_ref  : (mult*rows, K)           weights, row = m*rows + b*ni + g
    b_ref  : (mult*rows, 1)           bias, same row order
    o_ref  : (mult*rows, tl)          output, row = m*rows + b*ni + g
    win_ref: (stride*rows, tl+halo_w) f32 VMEM scratch (stitched, upcast once)
    """
    # Stitch main + halo into one window; upcast to f32 exactly once.
    win_ref[:, :tl] = xa_ref[...].astype(jnp.float32)
    win_ref[:, tl:] = xb_ref[...].astype(jnp.float32)
    w = w_ref[...].astype(jnp.float32)

    accs = [None] * mult
    for kt in range(kernel):                              # static, fully unrolled
        r, q = kt % stride, kt // stride
        # contiguous (rows, tl) slab: phase r; lane shift q absorbed by the vld.
        xs = win_ref[r * rows:(r + 1) * rows, q:q + tl]
        for m in range(mult):
            wk = w[m * rows:(m + 1) * rows, kt:kt + 1]    # (rows, 1)
            term = xs * wk
            accs[m] = term if accs[m] is None else accs[m] + term

    bias = b_ref[...].astype(jnp.float32)
    for m in range(mult):                                 # dense per-m stores, no concat
        o_ref[m * rows:(m + 1) * rows, :] = (
            accs[m] + bias[m * rows:(m + 1) * rows, :]).astype(o_ref.dtype)


def sep_conv1d(x, weight, bias, *, stride, pad, lane_cap=4096):
    """Equivalent of nn.Conv1d(ni, no, K, stride, padding=pad, groups=ni)(x).

    x:      (N, ni, L)
    weight: (no, 1, K)   (PyTorch layout; in_channels/groups == 1)
    bias:   (no,)
    returns (N, no, L_out)
    """
    n, ni, l = x.shape
    no, _, k = weight.shape
    assert no % ni == 0, "groups=ni requires no % ni == 0"
    mult = no // ni
    s = int(stride)
    l_out = (l + 2 * pad - k) // s + 1
    assert l_out >= 1
    qmax = (k - 1) // s                              # tap halo (deinterleaved samples)

    itemsize = jnp.dtype(x.dtype).itemsize
    halo_w = max(128, _round_up(qmax, 128))          # halo block width (lane-aligned)
    tl = min(_round_up(l_out, 128), max(128, _round_up(lane_cap, 128)))
    tl = _round_up(tl, halo_w)
    num_tiles = _cdiv(l_out, tl)
    l_out_pad = num_tiles * tl

    # Batch sub-block: fill the sublane axis (>=8 rows f32, >=16 sub-32-bit).
    sub = 8 if itemsize >= 4 else 16
    nb = sub // math.gcd(ni, sub)

    def step_bytes(nb_):
        rows_ = nb_ * ni
        return itemsize * rows_ * (s * (tl + halo_w) + mult * tl)

    # Grow the batch sub-block to amortize per-step overhead (~0.35us) while keeping
    # ~<=2 MiB moved per step (VMEM headroom incl. v7x) and >=2 grid steps (dual TC).
    while (nb * 2 <= n and step_bytes(nb * 2) <= (2 << 20)
           and _cdiv(n, nb * 2) * num_tiles >= 2):
        nb *= 2

    rows = nb * ni
    n_pad = _cdiv(n, nb) * nb
    bblocks = n_pad // nb
    ld = l_out_pad + halo_w                          # per-phase deinterleaved length
    l_need = ld * s
    right = l_need - l - pad
    assert right >= 0

    # ---- glue (single layout pass): pad + phase-deinterleave + batch-fold ----
    # x_d[bb, r*(nb*ni) + b*ni + c, j] = x_padded[bb*nb + b, c, j*s + r]
    x_p = jnp.pad(x, ((0, n_pad - n), (0, 0), (pad, right)))
    x_d = (x_p.reshape(bblocks, nb, ni, ld, s)
              .transpose(0, 4, 1, 2, 3)
              .reshape(bblocks, s * rows, ld))

    # weights / bias: kernel row = m*(nb*ni) + b*ni + g  (PyTorch co = g*mult + m)
    w_t = weight.reshape(ni, mult, k).transpose(1, 0, 2)              # (mult, ni, k)
    w_k = jnp.broadcast_to(w_t[:, None], (mult, nb, ni, k)).reshape(mult * rows, k)
    b_t = bias.reshape(ni, mult).T                                    # (mult, ni)
    b_k = jnp.broadcast_to(b_t[:, None], (mult, nb, ni)).reshape(mult * rows, 1)

    kern = functools.partial(_sepconv1d_kernel, kernel=k, stride=s, mult=mult,
                             rows=rows, tl=tl)

    out = pl.pallas_call(
        kern,
        out_shape=jax.ShapeDtypeStruct((bblocks, mult * rows, l_out_pad), x.dtype),
        grid=(bblocks, num_tiles),
        in_specs=[
            # main window: L-tile j
            pl.BlockSpec((pl.Squeezed(), s * rows, tl),
                         lambda b, j: (b, 0, j)),
            # halo: first halo_w lanes of L-tile j+1 (same array, second spec)
            pl.BlockSpec((pl.Squeezed(), s * rows, halo_w),
                         lambda b, j: (b, 0, (j + 1) * (tl // halo_w))),
            pl.BlockSpec((mult * rows, k), lambda b, j: (0, 0)),
            pl.BlockSpec((mult * rows, 1), lambda b, j: (0, 0)),
        ],
        out_specs=pl.BlockSpec((pl.Squeezed(), mult * rows, tl),
                               lambda b, j: (b, 0, j)),
        scratch_shapes=[pltpu.VMEM((s * rows, tl + halo_w), jnp.float32)],
        compiler_params=pltpu.CompilerParams(
            dimension_semantics=("parallel", "parallel")),
    )(x_d, x_d, w_k, b_k)

    # ---- glue: restore batch / PyTorch channel order co = g*mult + m ----
    y = (out.reshape(bblocks, mult, nb, ni, l_out_pad)
            .transpose(0, 2, 3, 1, 4)
            .reshape(n_pad, ni * mult, l_out_pad))
    return y[:n, :, :l_out]


def _reference(x, weight, bias, *, stride, pad):
    # Pure-JAX reference: grouped conv identical to PyTorch nn.Conv1d(groups=ni).
    ni = x.shape[1]
    y = lax.conv_general_dilated(
        x, weight,
        window_strides=(stride,),
        padding=[(pad, pad)],
        dimension_numbers=("NCH", "OIH", "NCH"),
        feature_group_count=ni,
    )
    return y + bias[None, :, None]


if __name__ == "__main__":
    key = jax.random.PRNGKey(0)

    def check(tag, n, ni, no, k, stride, pad, l, lane_cap=4096):
        kx, kw, kb = jax.random.split(jax.random.fold_in(key, tag), 3)
        x = jax.random.normal(kx, (n, ni, l), dtype=jnp.float32)
        w = jax.random.normal(kw, (no, 1, k), dtype=jnp.float32) * 0.1
        b = jax.random.normal(kb, (no,), dtype=jnp.float32) * 0.1
        out = jax.block_until_ready(
            sep_conv1d(x, w, b, stride=stride, pad=pad, lane_cap=lane_cap))
        ref = _reference(x, w, b, stride=stride, pad=pad)
        assert out.shape == ref.shape, (out.shape, ref.shape)
        assert jnp.allclose(out, ref, atol=1e-5, rtol=1e-5), "mismatch vs reference conv"

    # _SepConv1d(ni=4, no=8, kernel=3, stride=1, pad=1) at small shapes
    check(0, 2, 4, 8, 3, 1, 1, 16)
    # Duplo-style _SepConv1d(ni=4, no=8, kernel=8, stride=2, pad=3): stride>1 phases
    check(1, 2, 4, 8, 8, 2, 3, 16)
    # Multi-L-tile (small lane_cap forces 2 tiles): exercises the cross-tile halo
    check(2, 2, 4, 8, 8, 2, 3, 300, lane_cap=128)
    # mult=1, odd batch (exercises batch padding), 3 L tiles, stride=1
    check(3, 3, 4, 4, 5, 1, 2, 260, lane_cap=128)

    print("KERNEL_OK")
</pallas_src>

<mosaic_0001>
module attributes {stable_mosaic.version = 11 : i64} {
  func.func @_sepconv1d_kernel(%arg0: i32, %arg1: i32, %arg2: memref<1x8x128xf32, #tpu.memory_space<vmem>>, %arg3: memref<1x8x128xf32, #tpu.memory_space<vmem>>, %arg4: memref<16x3xf32, #tpu.memory_space<vmem>>, %arg5: memref<16x1xf32, #tpu.memory_space<vmem>>, %arg6: memref<1x16x128xf32, #tpu.memory_space<vmem>>, %arg7: memref<8x256xf32, #tpu.memory_space<vmem>>) attributes {dimension_semantics = [#tpu.dimension_semantics<parallel>, #tpu.dimension_semantics<parallel>], iteration_bounds = array<i64: 1, 1>, scalar_prefetch = 0 : i64, scratch_operands = 1 : i64, tpu.core_type = #tpu.core_type<tc>, window_params = [{transform_indices = @transform_0, window_bounds = array<i64: 1, 8, 128>}, {transform_indices = @transform_1, window_bounds = array<i64: 1, 8, 128>}, {pipeline_mode = #tpu.pipeline_mode<synchronous>, transform_indices = @transform_2, window_bounds = array<i64: 16, 3>}, {pipeline_mode = #tpu.pipeline_mode<synchronous>, transform_indices = @transform_3, window_bounds = array<i64: 16, 1>}, {transform_indices = @transform_4, window_bounds = array<i64: 1, 16, 128>}]} {
    %c0 = arith.constant 0 : index
    %c0_0 = arith.constant 0 : index
    %c0_1 = arith.constant 0 : index
    %0 = vector.load %arg2[%c0, %c0_0, %c0_1] : memref<1x8x128xf32, #tpu.memory_space<vmem>>, vector<1x8x128xf32>
    %1 = vector.shape_cast %0 : vector<1x8x128xf32> to vector<8x128xf32>
    %c0_2 = arith.constant 0 : index
    %c0_3 = arith.constant 0 : index
    %2 = vector.load %arg7[%c0_2, %c0_3] : memref<8x256xf32, #tpu.memory_space<vmem>>, vector<8x128xf32>
    tpu.vector_store %arg7[%c0_2, %c0_3], %1 {strides = array<i32>} : memref<8x256xf32, #tpu.memory_space<vmem>>, vector<8x128xf32>,
    %c0_4 = arith.constant 0 : index
    %c0_5 = arith.constant 0 : index
    %c0_6 = arith.constant 0 : index
    %3 = vector.load %arg3[%c0_4, %c0_5, %c0_6] : memref<1x8x128xf32, #tpu.memory_space<vmem>>, vector<1x8x128xf32>
    %4 = vector.shape_cast %3 : vector<1x8x128xf32> to vector<8x128xf32>
    %c0_7 = arith.constant 0 : index
    %c128 = arith.constant 128 : index
    %5 = vector.load %arg7[%c0_7, %c128] : memref<8x256xf32, #tpu.memory_space<vmem>>, vector<8x128xf32>
    tpu.vector_store %arg7[%c0_7, %c128], %4 {strides = array<i32>} : memref<8x256xf32, #tpu.memory_space<vmem>>, vector<8x128xf32>,
    %c0_8 = arith.constant 0 : index
    %c0_9 = arith.constant 0 : index
    %6 = vector.load %arg4[%c0_8, %c0_9] : memref<16x3xf32, #tpu.memory_space<vmem>>, vector<16x3xf32>
    %c0_10 = arith.constant 0 : index
    %c0_11 = arith.constant 0 : index
    %7 = vector.load %arg7[%c0_10, %c0_11] : memref<8x256xf32, #tpu.memory_space<vmem>>, vector<8x128xf32>
    %8 = vector.extract_strided_slice %6 {offsets = [0, 0], sizes = [8, 1], strides = [1, 1]} : vector<16x3xf32> to vector<8x1xf32>
    %9 = vector.broadcast %8 : vector<8x1xf32> to vector<8x128xf32>
    %10 = arith.mulf %7, %9 : vector<8x128xf32>
    %11 = vector.extract_strided_slice %6 {offsets = [8, 0], sizes = [8, 1], strides = [1, 1]} : vector<16x3xf32> to vector<8x1xf32>
    %12 = vector.broadcast %11 : vector<8x1xf32> to vector<8x128xf32>
    %13 = arith.mulf %7, %12 : vector<8x128xf32>
    %c0_12 = arith.constant 0 : index
    %c1 = arith.constant 1 : index
    %14 = vector.load %arg7[%c0_12, %c1] : memref<8x256xf32, #tpu.memory_space<vmem>>, vector<8x128xf32>
    %15 = vector.extract_strided_slice %6 {offsets = [0, 1], sizes = [8, 1], strides = [1, 1]} : vector<16x3xf32> to vector<8x1xf32>
    %16 = vector.broadcast %15 : vector<8x1xf32> to vector<8x128xf32>
    %17 = arith.mulf %14, %16 : vector<8x128xf32>
    %18 = arith.addf %10, %17 : vector<8x128xf32>
    %19 = vector.extract_strided_slice %6 {offsets = [8, 1], sizes = [8, 1], strides = [1, 1]} : vector<16x3xf32> to vector<8x1xf32>
    %20 = vector.broadcast %19 : vector<8x1xf32> to vector<8x128xf32>
    %21 = arith.mulf %14, %20 : vector<8x128xf32>
    %22 = arith.addf %13, %21 : vector<8x128xf32>
    %c0_13 = arith.constant 0 : index
    %c2 = arith.constant 2 : index
    %23 = vector.load %arg7[%c0_13, %c2] : memref<8x256xf32, #tpu.memory_space<vmem>>, vector<8x128xf32>
    %24 = vector.extract_strided_slice %6 {offsets = [0, 2], sizes = [8, 1], strides = [1, 1]} : vector<16x3xf32> to vector<8x1xf32>
    %25 = vector.broadcast %24 : vector<8x1xf32> to vector<8x128xf32>
    %26 = arith.mulf %23, %25 : vector<8x128xf32>
    %27 = arith.addf %18, %26 : vector<8x128xf32>
    %28 = vector.extract_strided_slice %6 {offsets = [8, 2], sizes = [8, 1], strides = [1, 1]} : vector<16x3xf32> to vector<8x1xf32>
    %29 = vector.broadcast %28 : vector<8x1xf32> to vector<8x128xf32>
    %30 = arith.mulf %23, %29 : vector<8x128xf32>
    %31 = arith.addf %22, %30 : vector<8x128xf32>
    %c0_14 = arith.constant 0 : index
    %c0_15 = arith.constant 0 : index
    %32 = vector.load %arg5[%c0_14, %c0_15] : memref<16x1xf32, #tpu.memory_space<vmem>>, vector<16x1xf32>
    %33 = vector.extract_strided_slice %32 {offsets = [0, 0], sizes = [8, 1], strides = [1, 1]} : vector<16x1xf32> to vector<8x1xf32>
    %34 = vector.broadcast %33 : vector<8x1xf32> to vector<8x128xf32>
    %35 = arith.addf %27, %34 : vector<8x128xf32>
    %c0_16 = arith.constant 0 : index
    %c0_17 = arith.constant 0 : index
    %c0_18 = arith.constant 0 : index
    %36 = vector.load %arg6[%c0_16, %c0_17, %c0_18] : memref<1x16x128xf32, #tpu.memory_space<vmem>>, vector<1x8x128xf32>
    %37 = vector.shape_cast %36 : vector<1x8x128xf32> to vector<8x128xf32>
    %38 = vector.shape_cast %35 : vector<8x128xf32> to vector<1x8x128xf32>
    tpu.vector_store %arg6[%c0_16, %c0_17, %c0_18], %38 {strides = array<i32>} : memref<1x16x128xf32, #tpu.memory_space<vmem>>, vector<1x8x128xf32>,
    %39 = vector.extract_strided_slice %32 {offsets = [8, 0], sizes = [8, 1], strides = [1, 1]} : vector<16x1xf32> to vector<8x1xf32>
    %40 = vector.broadcast %39 : vector<8x1xf32> to vector<8x128xf32>
    %41 = arith.addf %31, %40 : vector<8x128xf32>
    %c0_19 = arith.constant 0 : index
    %c8 = arith.constant 8 : index
    %c0_20 = arith.constant 0 : index
    %42 = vector.load %arg6[%c0_19, %c8, %c0_20] : memref<1x16x128xf32, #tpu.memory_space<vmem>>, vector<1x8x128xf32>
    %43 = vector.shape_cast %42 : vector<1x8x128xf32> to vector<8x128xf32>
    %44 = vector.shape_cast %41 : vector<8x128xf32> to vector<1x8x128xf32>
    tpu.vector_store %arg6[%c0_19, %c8, %c0_20], %44 {strides = array<i32>} : memref<1x16x128xf32, #tpu.memory_space<vmem>>, vector<1x8x128xf32>,
    return
  }
  func.func @transform_0(%arg0: i32, %arg1: i32) -> (i32, i32, i32) {
    %c0_i32 = arith.constant 0 : i32
    %c0_i32_0 = arith.constant 0 : i32
    return %arg0, %c0_i32, %arg1 : i32, i32, i32
  }
  func.func @transform_1(%arg0: i32, %arg1: i32) -> (i32, i32, i32) {
    %c1_i32 = arith.constant 1 : i32
    %0 = arith.addi %arg1, %c1_i32 : i32
    %c1_i32_0 = arith.constant 1 : i32
    %1 = arith.muli %0, %c1_i32_0 : i32
    %c0_i32 = arith.constant 0 : i32
    %c0_i32_1 = arith.constant 0 : i32
    return %arg0, %c0_i32, %1 : i32, i32, i32
  }
  func.func @transform_2(%arg0: i32, %arg1: i32) -> (i32, i32) {
    %c0_i32 = arith.constant 0 : i32
    %c0_i32_0 = arith.constant 0 : i32
    %c0_i32_1 = arith.constant 0 : i32
    return %c0_i32, %c0_i32_0 : i32, i32
  }
  func.func @transform_3(%arg0: i32, %arg1: i32) -> (i32, i32) {
    %c0_i32 = arith.constant 0 : i32
    %c0_i32_0 = arith.constant 0 : i32
    %c0_i32_1 = arith.constant 0 : i32
    return %c0_i32, %c0_i32_0 : i32, i32
  }
  func.func @transform_4(%arg0: i32, %arg1: i32) -> (i32, i32, i32) {
    %c0_i32 = arith.constant 0 : i32
    %c0_i32_0 = arith.constant 0 : i32
    return %arg0, %c0_i32, %arg1 : i32, i32, i32
  }
}

</mosaic_0001>

<llo_original>
// kernel: tpu_custom_call.1
$region0: #{tpu_custom_call.1}
  #allocation0 [shape = 'u32[]', space=smem, size = 0x4, offset = 0x4, fixed_abs, tag = 'smem constant byte address 0x4 - core index']
  #allocation1 [shape = 'u32[144,128]{1,0:T(1,128)}', space=vmem, size = 0x12000, scoped, tag = 'internal scratch']
  #allocation2 [shape = 'f32[8,256]{1,0:T(8,128)}', space=vmem, size = 0x2000, scoped, tag = 'scratch operand']
  %s0 = inlined_call_operand.vmem [shape: f32[1,8,256], index: 0, kind: input, shape index: {}]
  %s1 = inlined_call_operand.vmem [shape: f32[1,8,256], index: 1, kind: input, shape index: {}]
  %s2 = inlined_call_operand.vmem [shape: f32[16,3], index: 2, kind: input, shape index: {}]
  %s3 = inlined_call_operand.vmem [shape: f32[16,1], index: 3, kind: input, shape index: {}]
  %s4 = inlined_call_operand.hbm [shape: f32[1,16,128], index: 4, kind: output, shape index: {}]
  %s5 = sld [smem:[#allocation0]]
  $region26: #{tpu_custom_call.1} parent=0
    _
  %s7 = ssub.s32 1, %s5
  %s8 = scalar_select 0, %s7, %s5
  $region1: #{tpu_custom_call.1} parent=0
    #allocation3 [shape = 'u8[8192]{0}', space=vmem, size = 0x2000, scoped, tag = 'output window, operand 0, single buffered']
    #allocation4 [shape = 's32[1]{0}', space=sflag, size = 0x4, scoped, tag = 'scoped memory for tpu_custom_call.1']
    %9 = vsyncpa [#allocation4], 0
    // Predicated region
    $region2: #{tpu_custom_call.1} parent=1 // pred_check
      _
    $region3: #{tpu_custom_call.1} parent=1 // pred_check_branch
      %11 = sbr.rel (0) target = $region5
    $region4: #{tpu_custom_call.1} parent=1 // pred_region
      _
    $region5: #{tpu_custom_call.1} parent=1 // pred_fallthru
      _
    // Predicated region
    $region6: #{tpu_custom_call.1} parent=1 // pred_check
      _
    $region7: #{tpu_custom_call.1} parent=1 // pred_check_branch
      %13 = sbr.rel (0) target = $region9
    $region8: #{tpu_custom_call.1} parent=1 // pred_region
      %s14 = sadd.s32 0, 1
      %p15 = scmp.lt.s32.totalorder %s14, 1
      %s16 = scalar_select %p15, %s14, 1
      %s17 = smul.addr %s16, 8
      %s18 = scalar_lea.vmem %s1, %s17
      %s19 = sadd.s32 0, 1
    $region9: #{tpu_custom_call.1} parent=1 // pred_fallthru
      _
    // Predicated region
    $region10: #{tpu_custom_call.1} parent=1 // pred_check
      _
    $region11: #{tpu_custom_call.1} parent=1 // pred_check_branch
      %21 = sbr.rel (0) target = $region13
    $region12: #{tpu_custom_call.1} parent=1 // pred_region
      _
    $region13: #{tpu_custom_call.1} parent=1 // pred_fallthru
      _
    // Predicated region
    $region14: #{tpu_custom_call.1} parent=1 // pred_check
      _
    $region15: #{tpu_custom_call.1} parent=1 // pred_check_branch
      %23 = sbr.rel (0) target = $region17
    $region16: #{tpu_custom_call.1} parent=1 // pred_region
      _
    $region17: #{tpu_custom_call.1} parent=1 // pred_fallthru
      _
    %s24 = sadd.s32 0, 1
    %p25 = scmp.lt.s32.totalorder %s24, 1
    %s26 = scalar_select %p25, %s24, 1
    %s27 = smul.addr %s26, 8
    %s28 = scalar_lea.vmem %s1, %s27
    %s29 = sadd.s32 0, 1
    %p30 = scmp.lt.s32.totalorder %s29, 1
    %s31 = scalar_select %p30, %s29, 1
    %s32 = smul.addr %s31, 8
    %s33 = scalar_lea.vmem %s1, %s32
    %s34 = sadd.s32 0, 1
    %v35 = vld [vmem:[%s0] sm:$0xff]
    %36 = vst [vmem:[#allocation2] sm:$0xff] %v35
    %v37 = vld [vmem:[%s33] sm:$0xff]
    %38 = vst [vmem:[#allocation2 + $0x8] sm:$0xff] %v37
    %v39 = vld [vmem:[%s2] sm:$0xff]
    %v40 = vld [vmem:[%s2 + $0x8] sm:$0xff]
    %v41 = vld [vmem:[#allocation2] sm:$0xff]
    %43 = vset.pattern.permute.xlu0 0
    %44 = vperm.xlu0 %43, %v39
    %v45 = vpop.permute.xlu0 %44
    %v47 = vmul.f32 %v41, %v45
    %49 = vset.pattern.permute.xlu0 0
    %50 = vperm.xlu0 %49, %v40
    %v51 = vpop.permute.xlu0 %50
    %v53 = vmul.f32 %v41, %v51
    %v54 = vld [vmem:[#allocation2] sm:$0xff]
    %v55 = vld [vmem:[#allocation2 + $0x8] sm:$0xff]
    %56 = vset.pattern.permute.xlu0 1
    %57 = vperm.xlu0 %56, %v39
    %v58 = vpop.permute.xlu0 %57
    %v60 = vmul.f32 %v54, %v58
    %v61 = vmul.f32 %v55, %v58
    %64 = vrot.lane.b32.xlu0 %v60, 127
    %v65 = vpop.permute.xlu0 %64
    %66 = vrot.lane.b32.xlu0 %v61, 127
    %v67 = vpop.permute.xlu0 %66
    %vm68 = vcmask 1039360
    %v69 = vsel %vm68, %v65, %v67
    %v71 = vadd.f32 %v47, %v69
    %72 = vset.pattern.permute.xlu0 1
    %73 = vperm.xlu0 %72, %v40
    %v74 = vpop.permute.xlu0 %73
    %v76 = vmul.f32 %v54, %v74
    %v77 = vmul.f32 %v55, %v74
    %80 = vrot.lane.b32.xlu0 %v76, 127
    %v81 = vpop.permute.xlu0 %80
    %82 = vrot.lane.b32.xlu0 %v77, 127
    %v83 = vpop.permute.xlu0 %82
    %v84 = vsel %vm68, %v81, %v83
    %v86 = vadd.f32 %v53, %v84
    %87 = vset.pattern.permute.xlu0 2
    %88 = vperm.xlu0 %87, %v39
    %v89 = vpop.permute.xlu0 %88
    %v91 = vmul.f32 %v54, %v89
    %v92 = vmul.f32 %v55, %v89
    %95 = vrot.lane.b32.xlu0 %v91, 126
    %v96 = vpop.permute.xlu0 %95
    %97 = vrot.lane.b32.xlu0 %v92, 126
    %v98 = vpop.permute.xlu0 %97
    %vm99 = vcmask 1031168
    %v100 = vsel %vm99, %v96, %v98
    %v102 = vadd.f32 %v71, %v100
    %103 = vset.pattern.permute.xlu0 2
    %104 = vperm.xlu0 %103, %v40
    %v105 = vpop.permute.xlu0 %104
    %v107 = vmul.f32 %v54, %v105
    %v108 = vmul.f32 %v55, %v105
    %111 = vrot.lane.b32.xlu0 %v107, 126
    %v112 = vpop.permute.xlu0 %111
    %113 = vrot.lane.b32.xlu0 %v108, 126
    %v114 = vpop.permute.xlu0 %113
    %v115 = vsel %vm99, %v112, %v114
    %v117 = vadd.f32 %v86, %v115
    %v118 = vld [vmem:[%s3] sm:$0xff]
    %v119 = vld [vmem:[%s3 + $0x8] sm:$0xff]
    %121 = vset.pattern.permute.xlu0 0
    %122 = vperm.xlu0 %121, %v118
    %v123 = vpop.permute.xlu0 %122
    %v125 = vadd.f32 %v102, %v123
    %126 = vst [vmem:[#allocation3] sm:$0xff] %v125
    %128 = vset.pattern.permute.xlu0 0
    %129 = vperm.xlu0 %128, %v119
    %v130 = vpop.permute.xlu0 %129
    %v132 = vadd.f32 %v117, %v130
    %133 = vst [vmem:[#allocation3 + $0x8] sm:$0xff] %v132
    // Predicated region
    $region18: #{tpu_custom_call.1} parent=1 // pred_check
      _
    $region19: #{tpu_custom_call.1} parent=1 // pred_check_branch
      %135 = sbr.rel (0) target = $region21
    $region20: #{tpu_custom_call.1} parent=1 // pred_region
      %s137 = ssub.s32 256, 256
      %138 = vsyncadd [#allocation4], %s137
      %s139 = sshll.u32 [#allocation3], 4
      %s140 = int_to_ptr.vmem [resolvable:$true] %s139
      %145 = dma.vmem_to_hbm [thread:$0]  %s140, 256, %s4, [#allocation4], 128, 128, 8
    $region21: #{tpu_custom_call.1} parent=1 // pred_fallthru
      _
    // Predicated region
    $region22: #{tpu_custom_call.1} parent=1 // pred_check
      _
    $region23: #{tpu_custom_call.1} parent=1 // pred_check_branch
      %147 = sbr.rel (0) target = $region25
    $region24: #{tpu_custom_call.1} parent=1 // pred_region
      %148 = dma.done [#allocation4], 256
    $region25: #{tpu_custom_call.1} parent=1 // pred_fallthru
      _
    %149 = vsyncpa [#allocation4], 1

</llo_original>
